<compile_context>
chip_gen: v6e
topology: v6e:2x2x1
jax: 0.10.0
libtpu: 0.0.40
codegen_flags: <defaults>
</compile_context>

<pallas_src>
import jax
import jax.numpy as jnp
from jax.experimental import pallas as pl
from jax.experimental.pallas import tpu as pltpu

_LANES = 128
_TARGET_BLOCK_BYTES = 4 * 1024 * 1024     # ~4 MiB per block buffer
_VMEM_LIMIT_BYTES = 32 * 1024 * 1024      # covers in+out double-buffered 4 MiB blocks
_ONE_SIXTH = 1.0 / 6.0


def _hsigmoid_kernel(x_ref, o_ref):
    x = x_ref[...]
    # relu6(x + 3) * (1/6)
    o_ref[...] = (jnp.clip(x + 3.0, 0.0, 6.0) * _ONE_SIXTH).astype(o_ref.dtype)


def _sublane(dtype) -> int:
    """Sublane packing multiple for the dtype (8 x 32-bit rows per vreg)."""
    itemsize = jnp.dtype(dtype).itemsize
    return max(8, 32 // max(1, itemsize))


def _hsigmoid_slab(slab: jax.Array) -> jax.Array:
    """Hard-sigmoid over a lane-dense (rows, 128) slab."""
    rows, width = slab.shape
    dtype = slab.dtype
    itemsize = jnp.dtype(dtype).itemsize
    sub = _sublane(dtype)

    # Byte-budgeted rows per block, sublane-aligned.
    max_rows = max(sub, (_TARGET_BLOCK_BYTES // (width * itemsize)) // sub * sub)

    if rows <= max_rows:
        # Single whole-array block: one grid step, no tiling overhead.
        block_rows = rows
    else:
        # Even step count so v7x's two TensorCores get balanced work.
        n_steps = pl.cdiv(rows, max_rows)
        if n_steps % 2:
            n_steps += 1
        block_rows = pl.cdiv(rows, n_steps)
        block_rows = max(sub, pl.cdiv(block_rows, sub) * sub)

    grid = (pl.cdiv(rows, block_rows),)

    return pl.pallas_call(
        _hsigmoid_kernel,
        out_shape=jax.ShapeDtypeStruct((rows, width), dtype),
        grid_spec=pltpu.PrefetchScalarGridSpec(
            num_scalar_prefetch=0,
            grid=grid,
            in_specs=[pl.BlockSpec((block_rows, width), lambda i: (i, 0))],
            out_specs=pl.BlockSpec((block_rows, width), lambda i: (i, 0)),
        ),
        compiler_params=pltpu.CompilerParams(
            dimension_semantics=("parallel",),
            vmem_limit_bytes=_VMEM_LIMIT_BYTES,
        ),
    )(slab)


def _hsigmoid_tiny(slab: jax.Array) -> jax.Array:
    """Hard-sigmoid over a tiny (1, n) slab (n < 128): single full-array block."""
    rows, width = slab.shape
    return pl.pallas_call(
        _hsigmoid_kernel,
        out_shape=jax.ShapeDtypeStruct((rows, width), slab.dtype),
        grid_spec=pltpu.PrefetchScalarGridSpec(
            num_scalar_prefetch=0,
            grid=(1,),
            in_specs=[pl.BlockSpec((rows, width), lambda i: (0, 0))],
            out_specs=pl.BlockSpec((rows, width), lambda i: (0, 0)),
        ),
    )(slab)


def hsigmoid(x: jax.Array) -> jax.Array:
    """Elementwise hard-sigmoid matching torch's relu6(x + 3) / 6."""
    orig_shape = x.shape
    n = x.size
    if n == 0:
        return x

    flat = x.reshape(-1)
    rem = n % _LANES
    main = n - rem

    if rem == 0:
        # Hot path: lane-dense (rows, 128) slab, byte-budgeted row tiles.
        out = _hsigmoid_slab(flat.reshape(main // _LANES, _LANES))
        return out.reshape(orig_shape)

    if main == 0:
        # Whole tensor is < 128 elements.
        out = _hsigmoid_tiny(flat.reshape(1, n))
        return out.reshape(orig_shape)

    # Split: lane-dense main body + <128-element tail (tiny single-block call).
    main_out = _hsigmoid_slab(flat[:main].reshape(main // _LANES, _LANES)).reshape(-1)
    tail_out = _hsigmoid_tiny(flat[main:].reshape(1, rem)).reshape(-1)
    return jnp.concatenate([main_out, tail_out]).reshape(orig_shape)


def _ref_hsigmoid(x):
    return jnp.clip(x + 3.0, 0.0, 6.0) / 6.0


if __name__ == "__main__":
    key = jax.random.PRNGKey(0)

    # NCHW input, same convention as the PyTorch module.
    x = jax.random.normal(key, (2, 4, 16, 16), dtype=jnp.float32) * 4.0
    y = jax.block_until_ready(hsigmoid(x))
    assert y.shape == x.shape and y.dtype == x.dtype
    assert jnp.max(jnp.abs(y - _ref_hsigmoid(x))) < 1e-6

    # Exercise the hardened non-multiple-of-128 fallback paths.
    x_tiny = jax.random.normal(jax.random.PRNGKey(1), (3, 5, 7), dtype=jnp.float32) * 4.0
    y_tiny = jax.block_until_ready(hsigmoid(x_tiny))           # n = 105 < 128
    assert jnp.max(jnp.abs(y_tiny - _ref_hsigmoid(x_tiny))) < 1e-6

    x_tail = jax.random.normal(jax.random.PRNGKey(2), (130,), dtype=jnp.float32) * 4.0
    y_tail = jax.block_until_ready(hsigmoid(x_tail))           # 128 main + 2 tail
    assert jnp.max(jnp.abs(y_tail - _ref_hsigmoid(x_tail))) < 1e-6

    print("KERNEL_OK")
</pallas_src>

<mosaic_0001>
module attributes {stable_mosaic.version = 11 : i64} {
  func.func @_hsigmoid_kernel(%arg0: i32, %arg1: memref<16x128xf32, #tpu.memory_space<vmem>>, %arg2: memref<16x128xf32, #tpu.memory_space<vmem>>) attributes {dimension_semantics = [#tpu.dimension_semantics<parallel>], iteration_bounds = array<i64: 1>, scalar_prefetch = 0 : i64, scratch_operands = 0 : i64, tpu.core_type = #tpu.core_type<tc>, window_params = [{transform_indices = @transform_0, window_bounds = array<i64: 16, 128>}, {transform_indices = @transform_1, window_bounds = array<i64: 16, 128>}]} {
    %c0 = arith.constant 0 : index
    %c0_0 = arith.constant 0 : index
    %0 = vector.load %arg1[%c0, %c0_0] : memref<16x128xf32, #tpu.memory_space<vmem>>, vector<16x128xf32>
    %cst = arith.constant 3.000000e+00 : f32
    %1 = vector.broadcast %cst : f32 to vector<16x128xf32>
    %2 = arith.addf %0, %1 : vector<16x128xf32>
    %cst_1 = arith.constant 0.000000e+00 : f32
    %cst_2 = arith.constant 6.000000e+00 : f32
    %3 = vector.broadcast %cst_1 : f32 to vector<16x128xf32>
    %4 = arith.maximumf %3, %2 : vector<16x128xf32>
    %5 = vector.broadcast %cst_2 : f32 to vector<16x128xf32>
    %6 = arith.minimumf %5, %4 : vector<16x128xf32>
    %cst_3 = arith.constant 0.166666672 : f32
    %7 = vector.broadcast %cst_3 : f32 to vector<16x128xf32>
    %8 = arith.mulf %6, %7 : vector<16x128xf32>
    %c0_4 = arith.constant 0 : index
    %c0_5 = arith.constant 0 : index
    %9 = vector.load %arg2[%c0_4, %c0_5] : memref<16x128xf32, #tpu.memory_space<vmem>>, vector<16x128xf32>
    tpu.vector_store %arg2[%c0_4, %c0_5], %8 {strides = array<i32>} : memref<16x128xf32, #tpu.memory_space<vmem>>, vector<16x128xf32>,
    return
  }
  func.func @transform_0(%arg0: i32) -> (i32, i32) {
    %c0_i32 = arith.constant 0 : i32
    %c0_i32_0 = arith.constant 0 : i32
    return %arg0, %c0_i32 : i32, i32
  }
  func.func @transform_1(%arg0: i32) -> (i32, i32) {
    %c0_i32 = arith.constant 0 : i32
    %c0_i32_0 = arith.constant 0 : i32
    return %arg0, %c0_i32 : i32, i32
  }
}

</mosaic_0001>

<llo_original>
// kernel: tpu_custom_call.1
$region0: #{tpu_custom_call.1}
  #allocation0 [shape = 'u32[]', space=smem, size = 0x4, offset = 0x4, fixed_abs, tag = 'smem constant byte address 0x4 - core index']
  #allocation1 [shape = 'u32[144,128]{1,0:T(1,128)}', space=vmem, size = 0x12000, scoped, tag = 'internal scratch']
  %s0 = inlined_call_operand.hbm [shape: f32[16,128], index: 0, kind: input, shape index: {}]
  %s1 = inlined_call_operand.hbm [shape: f32[16,128], index: 1, kind: output, shape index: {}]
  %s2 = sld [smem:[#allocation0]]
  $region18: #{tpu_custom_call.1} parent=0
    _
  %s4 = ssub.s32 1, %s2
  %s5 = scalar_select 0, %s4, %s2
  $region1: #{tpu_custom_call.1} parent=0
    #allocation2 [shape = 'u8[8192]{0}', space=vmem, size = 0x2000, scoped, tag = 'input window, operand 0, single buffered']
    #allocation3 [shape = 's32[1]{0}', space=sflag, size = 0x4, scoped, tag = 'scoped memory for tpu_custom_call.1']
    #allocation4 [shape = 's32[1]{0}', space=sflag, size = 0x4, scoped, tag = 'scoped memory for tpu_custom_call.1']
    #allocation5 [shape = 'u8[8192]{0}', space=vmem, size = 0x2000, scoped, tag = 'output window, operand 0, single buffered']
    %6 = vsyncpa [#allocation3], 0
    %7 = vsyncpa [#allocation4], 0
    // Predicated region
    $region2: #{tpu_custom_call.1} parent=1 // pred_check
      _
    $region3: #{tpu_custom_call.1} parent=1 // pred_check_branch
      %9 = sbr.rel (0) target = $region5
    $region4: #{tpu_custom_call.1} parent=1 // pred_region
      %s11 = ssub.s32 256, 256
      %12 = vsyncadd [#allocation3], %s11
      %s13 = sshll.u32 [#allocation2], 4
      %s14 = int_to_ptr.vmem [resolvable:$true] %s13
      %19 = dma.hbm_to_vmem [thread:$0]  %s0, 256, %s14, [#allocation3], 128, 128, 8
    $region5: #{tpu_custom_call.1} parent=1 // pred_fallthru
      _
    // Predicated region
    $region6: #{tpu_custom_call.1} parent=1 // pred_check
      _
    $region7: #{tpu_custom_call.1} parent=1 // pred_check_branch
      %21 = sbr.rel (0) target = $region9
    $region8: #{tpu_custom_call.1} parent=1 // pred_region
      %22 = dma.done [#allocation3], 256
    $region9: #{tpu_custom_call.1} parent=1 // pred_fallthru
      _
    %v23 = vld [vmem:[#allocation2] sm:$0xff]
    %v24 = vld [vmem:[#allocation2 + $0x8] sm:$0xff]
    %v25 = vadd.f32 %v23, 3.0
    %v26 = vadd.f32 %v24, 3.0
    %v27 = vmax.f32 %v25, 0.0
    %v28 = vmax.f32 %v26, 0.0
    %v29 = vmin.f32 %v27, 6.0
    %v30 = vmin.f32 %v28, 6.0
    %v31 = vmul.f32 %v29, 0.16666667
    %v32 = vmul.f32 %v30, 0.16666667
    %33 = vst [vmem:[#allocation5] sm:$0xff] %v31
    %34 = vst [vmem:[#allocation5 + $0x8] sm:$0xff] %v32
    // Predicated region
    $region10: #{tpu_custom_call.1} parent=1 // pred_check
      _
    $region11: #{tpu_custom_call.1} parent=1 // pred_check_branch
      %36 = sbr.rel (0) target = $region13
    $region12: #{tpu_custom_call.1} parent=1 // pred_region
      %s38 = ssub.s32 256, 256
      %39 = vsyncadd [#allocation4], %s38
      %s40 = sshll.u32 [#allocation5], 4
      %s41 = int_to_ptr.vmem [resolvable:$true] %s40
      %46 = dma.vmem_to_hbm [thread:$0]  %s41, 256, %s1, [#allocation4], 128, 128, 8
    $region13: #{tpu_custom_call.1} parent=1 // pred_fallthru
      _
    // Predicated region
    $region14: #{tpu_custom_call.1} parent=1 // pred_check
      _
    $region15: #{tpu_custom_call.1} parent=1 // pred_check_branch
      %48 = sbr.rel (0) target = $region17
    $region16: #{tpu_custom_call.1} parent=1 // pred_region
      %49 = dma.done [#allocation4], 256
    $region17: #{tpu_custom_call.1} parent=1 // pred_fallthru
      _
    %50 = vsyncpa [#allocation3], 1
    %51 = vsyncpa [#allocation4], 1

</llo_original>
